<compile_context>
chip_gen: v6e
topology: v6e:2x2x1
jax: 0.10.0
libtpu: 0.0.40
codegen_flags: <defaults>
</compile_context>

<pallas_src>
import functools

import jax
import jax.numpy as jnp
from jax.experimental import pallas as pl
from jax.experimental.pallas import tpu as pltpu

EPS = 1e-6

# Abramowitz & Stegun 4.4.46: acos(x) = sqrt(1-x) * P7(x) on [0, 1], |err| <= 2e-8.
_ACOS_COEFFS = (
    -0.0012624911, 0.0066700901, -0.0170881256, 0.0308918810,
    -0.0501743046, 0.0889789874, -0.2145988016, 1.5707963050,
)


def _acos(x):
    """Elementwise arccos on [-1, 1] using only sqrt + FMAs (Mosaic-safe)."""
    ax = jnp.abs(x)
    p = jnp.float32(_ACOS_COEFFS[0])
    for c in _ACOS_COEFFS[1:]:
        p = p * ax + jnp.float32(c)
    r = jnp.sqrt(jnp.maximum(1.0 - ax, 0.0)) * p          # acos(|x|)
    return jnp.where(x >= 0.0, r, jnp.float32(jnp.pi) - r)


def _pose_loss(gt_ref, pred_ref):
    """(9, TB) blocks -> (1, TB) per-pose geodesic loss."""
    prod = gt_ref[...] * pred_ref[...]                     # VPU elementwise
    tr = jnp.sum(prod, axis=0, keepdims=True)              # 9-sublane reduce
    theta = jnp.clip((tr - 1.0) * 0.5, -1.0 + EPS, 1.0 - EPS)
    return _acos(theta)                                    # fused arccos


def _rotdist_mean_kernel(gt_ref, pred_ref, psum_ref, *, total):
    """Writes one masked per-tile partial sum (broadcast over 128 lanes)."""
    tb = gt_ref.shape[1]
    i = pl.program_id(0)
    loss = _pose_loss(gt_ref, pred_ref)                    # (1, TB)
    col = jax.lax.broadcasted_iota(jnp.int32, (1, tb), 1) + i * tb
    loss = jnp.where(col < total, loss, 0.0)               # explicit ragged-tail mask
    psum = jnp.sum(loss, axis=1, keepdims=True)            # (1, 1)
    psum_ref[...] = jnp.broadcast_to(psum, psum_ref.shape)  # (1, 1, 128)


def _rotdist_loss_kernel(gt_ref, pred_ref, loss_ref):
    """reduction='none': lane-dense per-pose loss (ragged tail handled by Pallas)."""
    loss_ref[...] = _pose_loss(gt_ref, pred_ref)


def _round_up(x, m):
    return ((x + m - 1) // m) * m


@functools.partial(jax.jit, static_argnames=("reduction", "tb"))
def rot_dist(gt_pose, pred_pose, reduction="mean", tb=32768):
    """JAX/Pallas equivalent of RotDist.forward(gt_pose, pred_pose)."""
    gt = jnp.reshape(gt_pose, (-1, 9))
    pred = jnp.reshape(pred_pose, (-1, 9))
    if gt.dtype != jnp.float32:
        gt = gt.astype(jnp.float32)
    if pred.dtype != jnp.float32:
        pred = pred.astype(jnp.float32)
    b = gt.shape[0]

    # Entry-major relayout (batch -> lanes, matrix entries -> sublanes).
    gt_t = gt.T                                            # (9, B)
    pred_t = pred.T                                        # (9, B)

    # Lane tile: multiple of 128; capped so moderate batches get >=4 grid steps
    # (megacore sharding on v7x + pipeline overlap).
    tb = _round_up(max(int(tb), 128), 128)
    tb = min(tb, _round_up(max(-(-b // 4), 1), 128))
    num_tiles = pl.cdiv(b, tb)

    in_specs = [
        pl.BlockSpec((9, tb), lambda i: (0, i)),
        pl.BlockSpec((9, tb), lambda i: (0, i)),
    ]
    compiler_params = pltpu.CompilerParams(
        dimension_semantics=("parallel",),
        vmem_limit_bytes=32 * 1024 * 1024,
    )

    if reduction == "mean":
        partials = pl.pallas_call(
            functools.partial(_rotdist_mean_kernel, total=b),
            out_shape=jax.ShapeDtypeStruct((num_tiles, 1, 128), jnp.float32),
            grid=(num_tiles,),
            in_specs=in_specs,
            out_specs=pl.BlockSpec((1, 1, 128), lambda i: (i, 0, 0)),
            compiler_params=compiler_params,
        )(gt_t, pred_t)
        return jnp.sum(partials[:, 0, 0]) / b

    # reduction == 'none' (or anything not 'mean', matching the torch module).
    loss = pl.pallas_call(
        _rotdist_loss_kernel,
        out_shape=jax.ShapeDtypeStruct((1, b), jnp.float32),
        grid=(num_tiles,),
        in_specs=in_specs,
        out_specs=pl.BlockSpec((1, tb), lambda i: (0, i)),
        compiler_params=compiler_params,
    )(gt_t, pred_t)
    return loss[0]


def _rot_dist_ref(gt_pose, pred_pose, reduction="mean"):
    gt = gt_pose.reshape(-1, 3, 3).astype(jnp.float32)
    pred = pred_pose.reshape(-1, 3, 3).astype(jnp.float32)
    tr = jnp.einsum("bij,bij->b", pred, gt)
    theta = (tr - 1.0) * 0.5
    loss = jnp.arccos(jnp.clip(theta, -1.0 + EPS, 1.0 - EPS))
    if reduction == "mean":
        return loss.mean()
    return loss


if __name__ == "__main__":
    key = jax.random.PRNGKey(0)
    k_gt, k_pred = jax.random.split(key)

    # RotDist has no learned parameters; inputs are batches of 3x3 pose matrices.
    # B=300 exercises multi-tile grids AND the ragged-tail masking (300 % 128 != 0).
    B = 300
    gt_pose = jax.random.normal(k_gt, (B, 3, 3), dtype=jnp.float32)
    pred_pose = jax.random.normal(k_pred, (B, 3, 3), dtype=jnp.float32)

    out_mean = jax.block_until_ready(rot_dist(gt_pose, pred_pose, reduction="mean"))
    ref_mean = jax.block_until_ready(_rot_dist_ref(gt_pose, pred_pose, reduction="mean"))
    assert jnp.allclose(out_mean, ref_mean, atol=1e-5, rtol=1e-5), (out_mean, ref_mean)

    out_none = jax.block_until_ready(rot_dist(gt_pose, pred_pose, reduction="none"))
    ref_none = jax.block_until_ready(_rot_dist_ref(gt_pose, pred_pose, reduction="none"))
    assert jnp.allclose(out_none, ref_none, atol=1e-5, rtol=1e-5)

    print("KERNEL_OK")
</pallas_src>

<mosaic_0001>
module attributes {stable_mosaic.version = 11 : i64} {
  func.func @_rotdist_mean_kernel(%arg0: i32, %arg1: memref<9x128xf32, #tpu.memory_space<vmem>>, %arg2: memref<9x128xf32, #tpu.memory_space<vmem>>, %arg3: memref<1x1x128xf32, #tpu.memory_space<vmem>>) attributes {dimension_semantics = [#tpu.dimension_semantics<parallel>], iteration_bounds = array<i64: 3>, scalar_prefetch = 0 : i64, scratch_operands = 0 : i64, tpu.core_type = #tpu.core_type<tc>, window_params = [{transform_indices = @transform_0, window_bounds = array<i64: 9, 128>}, {transform_indices = @transform_1, window_bounds = array<i64: 9, 128>}, {transform_indices = @transform_2, window_bounds = array<i64: 1, 1, 128>}]} {
    %c0 = arith.constant 0 : index
    %c0_0 = arith.constant 0 : index
    %0 = vector.load %arg1[%c0, %c0_0] : memref<9x128xf32, #tpu.memory_space<vmem>>, vector<9x128xf32>
    %c0_1 = arith.constant 0 : index
    %c0_2 = arith.constant 0 : index
    %1 = vector.load %arg2[%c0_1, %c0_2] : memref<9x128xf32, #tpu.memory_space<vmem>>, vector<9x128xf32>
    %2 = arith.mulf %0, %1 : vector<9x128xf32>
    %cst = arith.constant dense<0.000000e+00> : vector<128xf32>
    %3 = vector.multi_reduction <add>, %2, %cst [0] : vector<9x128xf32> to vector<128xf32>
    %4 = vector.shape_cast %3 : vector<128xf32> to vector<1x128xf32>
    %cst_3 = arith.constant 1.000000e+00 : f32
    %5 = vector.broadcast %cst_3 : f32 to vector<1x128xf32>
    %6 = arith.subf %4, %5 : vector<1x128xf32>
    %cst_4 = arith.constant 5.000000e-01 : f32
    %7 = vector.broadcast %cst_4 : f32 to vector<1x128xf32>
    %8 = arith.mulf %6, %7 : vector<1x128xf32>
    %cst_5 = arith.constant -0.999998986 : f32
    %cst_6 = arith.constant 0.999998986 : f32
    %9 = vector.broadcast %cst_5 : f32 to vector<1x128xf32>
    %10 = arith.maximumf %9, %8 : vector<1x128xf32>
    %11 = vector.broadcast %cst_6 : f32 to vector<1x128xf32>
    %12 = arith.minimumf %11, %10 : vector<1x128xf32>
    %13 = math.absf %12 : vector<1x128xf32>
    %cst_7 = arith.constant -0.0012624911 : f32
    %14 = vector.broadcast %cst_7 : f32 to vector<1x128xf32>
    %15 = arith.mulf %14, %13 : vector<1x128xf32>
    %cst_8 = arith.constant 6.670090e-03 : f32
    %16 = vector.broadcast %cst_8 : f32 to vector<1x128xf32>
    %17 = arith.addf %15, %16 : vector<1x128xf32>
    %18 = arith.mulf %17, %13 : vector<1x128xf32>
    %cst_9 = arith.constant -0.0170881264 : f32
    %19 = vector.broadcast %cst_9 : f32 to vector<1x128xf32>
    %20 = arith.addf %18, %19 : vector<1x128xf32>
    %21 = arith.mulf %20, %13 : vector<1x128xf32>
    %cst_10 = arith.constant 0.0308918804 : f32
    %22 = vector.broadcast %cst_10 : f32 to vector<1x128xf32>
    %23 = arith.addf %21, %22 : vector<1x128xf32>
    %24 = arith.mulf %23, %13 : vector<1x128xf32>
    %cst_11 = arith.constant -0.0501743034 : f32
    %25 = vector.broadcast %cst_11 : f32 to vector<1x128xf32>
    %26 = arith.addf %24, %25 : vector<1x128xf32>
    %27 = arith.mulf %26, %13 : vector<1x128xf32>
    %cst_12 = arith.constant 0.0889789909 : f32
    %28 = vector.broadcast %cst_12 : f32 to vector<1x128xf32>
    %29 = arith.addf %27, %28 : vector<1x128xf32>
    %30 = arith.mulf %29, %13 : vector<1x128xf32>
    %cst_13 = arith.constant -0.214598805 : f32
    %31 = vector.broadcast %cst_13 : f32 to vector<1x128xf32>
    %32 = arith.addf %30, %31 : vector<1x128xf32>
    %33 = arith.mulf %32, %13 : vector<1x128xf32>
    %cst_14 = arith.constant 1.57079625 : f32
    %34 = vector.broadcast %cst_14 : f32 to vector<1x128xf32>
    %35 = arith.addf %33, %34 : vector<1x128xf32>
    %cst_15 = arith.constant 1.000000e+00 : f32
    %36 = vector.broadcast %cst_15 : f32 to vector<1x128xf32>
    %37 = arith.subf %36, %13 : vector<1x128xf32>
    %cst_16 = arith.constant 0.000000e+00 : f32
    %38 = vector.broadcast %cst_16 : f32 to vector<1x128xf32>
    %39 = arith.maximumf %37, %38 : vector<1x128xf32>
    %40 = math.sqrt %39 : vector<1x128xf32>
    %41 = arith.mulf %40, %35 : vector<1x128xf32>
    %cst_17 = arith.constant 0.000000e+00 : f32
    %42 = vector.broadcast %cst_17 : f32 to vector<1x128xf32>
    %43 = arith.cmpf oge, %12, %42 : vector<1x128xf32>
    %cst_18 = arith.constant 3.14159274 : f32
    %44 = vector.broadcast %cst_18 : f32 to vector<1x128xf32>
    %45 = arith.subf %44, %41 : vector<1x128xf32>
    %46 = arith.select %43, %41, %45 : vector<1x128xi1>, vector<1x128xf32>
    %47 = tpu.iota {dimensions = array<i32: 1>} : vector<1x128xi32>
    %c128_i32 = arith.constant 128 : i32
    %48 = arith.muli %arg0, %c128_i32 : i32
    %49 = vector.broadcast %48 : i32 to vector<1x128xi32>
    %50 = arith.addi %47, %49 : vector<1x128xi32>
    %c300_i32 = arith.constant 300 : i32
    %51 = vector.broadcast %c300_i32 : i32 to vector<1x128xi32>
    %52 = arith.cmpi slt, %50, %51 : vector<1x128xi32>
    %cst_19 = arith.constant 0.000000e+00 : f32
    %53 = vector.broadcast %cst_19 : f32 to vector<1x128xf32>
    %54 = arith.select %52, %46, %53 : vector<1x128xi1>, vector<1x128xf32>
    %cst_20 = arith.constant dense<0.000000e+00> : vector<1xf32>
    %55 = vector.multi_reduction <add>, %54, %cst_20 [1] : vector<1x128xf32> to vector<1xf32>
    %56 = vector.shape_cast %55 : vector<1xf32> to vector<1x1xf32>
    %57 = vector.shape_cast %56 : vector<1x1xf32> to vector<1x1x1xf32>
    %58 = vector.broadcast %57 : vector<1x1x1xf32> to vector<1x1x128xf32>
    %c0_21 = arith.constant 0 : index
    %c0_22 = arith.constant 0 : index
    %c0_23 = arith.constant 0 : index
    %59 = vector.load %arg3[%c0_21, %c0_22, %c0_23] : memref<1x1x128xf32, #tpu.memory_space<vmem>>, vector<1x1x128xf32>
    tpu.vector_store %arg3[%c0_21, %c0_22, %c0_23], %58 {strides = array<i32>} : memref<1x1x128xf32, #tpu.memory_space<vmem>>, vector<1x1x128xf32>,
    return
  }
  func.func @transform_0(%arg0: i32) -> (i32, i32) {
    %c0_i32 = arith.constant 0 : i32
    %c0_i32_0 = arith.constant 0 : i32
    return %c0_i32, %arg0 : i32, i32
  }
  func.func @transform_1(%arg0: i32) -> (i32, i32) {
    %c0_i32 = arith.constant 0 : i32
    %c0_i32_0 = arith.constant 0 : i32
    return %c0_i32, %arg0 : i32, i32
  }
  func.func @transform_2(%arg0: i32) -> (i32, i32, i32) {
    %c0_i32 = arith.constant 0 : i32
    %c0_i32_0 = arith.constant 0 : i32
    %c0_i32_1 = arith.constant 0 : i32
    return %arg0, %c0_i32, %c0_i32_0 : i32, i32, i32
  }
}

</mosaic_0001>

<llo_original>
// kernel: rot_dist.1
$region0: #{rot_dist.1}
  #allocation0 [shape = 'u32[]', space=smem, size = 0x4, offset = 0x4, fixed_abs, tag = 'smem constant byte address 0x4 - core index']
  #allocation1 [shape = 'u32[144,128]{1,0:T(1,128)}', space=vmem, size = 0x12000, scoped, tag = 'internal scratch']
  %s0 = inlined_call_operand.vmem [shape: f32[9,300], index: 0, kind: input, shape index: {}]
  %s1 = inlined_call_operand.vmem [shape: f32[9,300], index: 1, kind: input, shape index: {}]
  %s2 = inlined_call_operand.vmem [shape: f32[3,1,128], index: 2, kind: output, shape index: {}]
  %s3 = sld [smem:[#allocation0]]
  $region117: #{rot_dist.1} parent=0
    _
  %s5 = ssub.s32 1, %s3
  %s6 = scalar_select 0, %s5, %s3
  $region1: #{rot_dist.1} parent=0
    #allocation2 [shape = 'u8[16384]{0}', space=vmem, size = 0x4000, scoped, tag = 'input window, operand 0']
    #allocation3 [shape = 'u8[16384]{0}', space=vmem, size = 0x4000, scoped, tag = 'input window, operand 1']
    loop: start=0, step=1, limit=5
    $region2: #{rot_dist.1} parent=1 // loop_pre_header
      _
    $region3: #{rot_dist.1} parent=1 // loop_header
      %s8 = sphi 0, %s12
      %p9 = scmp.ge.s32.totalorder %s8, 5
      %s18 = sphi 0, %s20
      %s21 = sphi 0, %s18
      %s22 = sphi 0, %s21
      %s38 = sphi 0, %s22
      %s44 = sphi 0, %s46
      %s47 = sphi 0, %s44
      %s48 = sphi 0, %s47
      %s64 = sphi 0, %s48
      %s70 = sphi 0, %s72
      %s73 = sphi 0, %s70
      %s74 = sphi 0, %s73
      %s90 = sphi 0, %s74
    $region4: #{rot_dist.1} parent=1 // loop_header_branch
      %11 = sbr.rel (%p9) target = $region8
    $region5: #{rot_dist.1} parent=1 // loop_body
      %s13 = ssub.s32 %s8, 1
      %s14 = ssub.s32 %s8, 2
      %s15 = sadd.s32 %s8, 1
      %s16 = ssub.s32 %s8, %s15
      %p17 = scmp.eq.s32.totalorder %s16, 0
      %s19 = sadd.s32 %s18, 1
      %s20 = scalar_select %p17, %s18, %s19
      %p23 = pneg %p17
      %p24 = scmp.eq.s32.totalorder %s8, 2
      %p25 = por %p23, %p24
      %p26 = scmp.ne.s32.totalorder %s18, %s21
      %p27 = scmp.eq.s32.totalorder %s8, 0
      %p28 = por %p26, %p27
      %p29 = scmp.ne.s32.totalorder %s18, %s21
      %p30 = scmp.eq.s32.totalorder %s13, 2
      %p31 = por %p29, %p30
      %p32 = scmp.ne.s32.totalorder %s21, %s22
      %p33 = scmp.eq.s32.totalorder %s13, 0
      %p34 = por %p32, %p33
      %p35 = scmp.ne.s32.totalorder %s21, %s22
      %p36 = scmp.eq.s32.totalorder %s14, 2
      %p37 = por %p35, %p36
      %p39 = scmp.ne.s32.totalorder %s22, %s38
      %p40 = scmp.eq.s32.totalorder %s14, 0
      %p41 = por %p39, %p40
      %s42 = ssub.s32 %s8, %s15
      %p43 = scmp.eq.s32.totalorder %s42, 0
      %s45 = sadd.s32 %s44, 1
      %s46 = scalar_select %p43, %s44, %s45
      %p49 = pneg %p43
      %p50 = scmp.eq.s32.totalorder %s8, 2
      %p51 = por %p49, %p50
      %p52 = scmp.ne.s32.totalorder %s44, %s47
      %p53 = scmp.eq.s32.totalorder %s8, 0
      %p54 = por %p52, %p53
      %p55 = scmp.ne.s32.totalorder %s44, %s47
      %p56 = scmp.eq.s32.totalorder %s13, 2
      %p57 = por %p55, %p56
      %p58 = scmp.ne.s32.totalorder %s47, %s48
      %p59 = scmp.eq.s32.totalorder %s13, 0
      %p60 = por %p58, %p59
      %p61 = scmp.ne.s32.totalorder %s47, %s48
      %p62 = scmp.eq.s32.totalorder %s14, 2
      %p63 = por %p61, %p62
      %p65 = scmp.ne.s32.totalorder %s48, %s64
      %p66 = scmp.eq.s32.totalorder %s14, 0
      %p67 = por %p65, %p66
      %s68 = ssub.s32 %s8, %s15
      %p69 = scmp.eq.s32.totalorder %s68, 0
      %s71 = sadd.s32 %s70, 1
      %s72 = scalar_select %p69, %s70, %s71
      %p75 = pneg %p69
      %p76 = scmp.eq.s32.totalorder %s8, 2
      %p77 = por %p75, %p76
      %p78 = scmp.ne.s32.totalorder %s70, %s73
      %p79 = scmp.eq.s32.totalorder %s8, 0
      %p80 = por %p78, %p79
      %p81 = scmp.ne.s32.totalorder %s70, %s73
      %p82 = scmp.eq.s32.totalorder %s13, 2
      %p83 = por %p81, %p82
      %p84 = scmp.ne.s32.totalorder %s73, %s74
      %p85 = scmp.eq.s32.totalorder %s13, 0
      %p86 = por %p84, %p85
      %p87 = scmp.ne.s32.totalorder %s73, %s74
      %p88 = scmp.eq.s32.totalorder %s14, 2
      %p89 = por %p87, %p88
      %p91 = scmp.ne.s32.totalorder %s74, %s90
      %p92 = scmp.eq.s32.totalorder %s14, 0
      %p93 = por %p91, %p92
      %p94 = scmp.le.s32.totalorder 1, %s8
      %p95 = scmp.lt.s32.totalorder %s8, 4
      %p96 = pnand %p94, %p95
      %p97 = pneg %p96
      // Predicated region
      $region9: #{rot_dist.1} parent=5 // pred_check
        _
      $region10: #{rot_dist.1} parent=5 // pred_check_branch
        %99 = sbr.rel (%p96) target = $region12
      $region11: #{rot_dist.1} parent=5 // pred_region
        %s100 = ssub.s32 %s8, 1
      $region12: #{rot_dist.1} parent=5 // pred_fallthru
        _
      %p101 = scmp.lt.s32.totalorder %s8, 3
      // Predicated region
      $region13: #{rot_dist.1} parent=5 // pred_check
        %p102 = pneg %p101
      $region14: #{rot_dist.1} parent=5 // pred_check_branch
        %104 = sbr.rel (%p102) target = $region16
      $region15: #{rot_dist.1} parent=5 // pred_region
        // Predicated region
        $region17: #{rot_dist.1} parent=15 // pred_check
          %p105 = pneg %p28
        $region18: #{rot_dist.1} parent=15 // pred_check_branch
          %107 = sbr.rel (%p105) target = $region20
        $region19: #{rot_dist.1} parent=15 // pred_region
          %s108 = sand.u32 %s18, 1
          %s109 = sand.u32 %s18, 1
          %s110 = smul.addr %s109, 16
          %s111 = scalar_lea.vmem [#allocation2], %s110
          %s112 = smul.addr %s8, 8
          %s113 = scalar_lea.vmem %s0, %s112
          // Predicated region
          $region21: #{rot_dist.1} parent=19 // pred_check
            _
          $region22: #{rot_dist.1} parent=19 // pred_check_branch
            %115 = sbr.rel (0) target = $region24
          $region23: #{rot_dist.1} parent=19 // pred_region
            // Predicated region
            $region25: #{rot_dist.1} parent=23 // pred_check
              _
            $region26: #{rot_dist.1} parent=23 // pred_check_branch
              %117 = sbr.rel (0) target = $region28
            $region27: #{rot_dist.1} parent=23 // pred_region
              // Predicated region
              $region40: #{rot_dist.1} parent=27 // pred_check
                _
              $region41: #{rot_dist.1} parent=27 // pred_check_branch
                %135 = sbr.rel (0) target = $region43
              $region42: #{rot_dist.1} parent=27 // pred_region
                loop: start=0, step=1, limit=1
                $region44: #{rot_dist.1} parent=42 // loop_pre_header
                  _
                $region45: #{rot_dist.1} parent=42 // loop_header
                  %s137 = sphi 0, %s141
                  %p138 = scmp.ge.s32.totalorder %s137, 1
                  %s142 = sphi %s113, %s113
                  %s143 = sphi %s111, %s111
                $region46: #{rot_dist.1} parent=42 // loop_header_branch
                  %140 = sbr.rel (%p138) target = $region50
                $region47: #{rot_dist.1} parent=42 // loop_body
                  %v144 = vld [vmem:[%s142] sm:$0xff]
                  %145 = vst [vmem:[%s143] sm:$0xff] %v144
                  %v146 = vld [vmem:[%s142 + $0x18] sm:$0xff]
                  %147 = vst [vmem:[%s143 + $0x8] sm:$0xff] %v146
                $region48: #{rot_dist.1} parent=42 // loop_footer
                  %s141 = sadd.s32 1, %s137
                $region49: #{rot_dist.1} parent=42 // loop_footer_branch
                  %136 = sbr.rel target = $region45
                $region50: #{rot_dist.1} parent=42 // loop_exit
                  _
              $region43: #{rot_dist.1} parent=27 // pred_fallthru
                _
              // Predicated region
              $region51: #{rot_dist.1} parent=27 // pred_check
                _
              $region52: #{rot_dist.1} parent=27 // pred_check_branch
                %149 = sbr.rel target = $region54
              $region53: #{rot_dist.1} parent=27 // pred_region
                _
              $region54: #{rot_dist.1} parent=27 // pred_fallthru
                _
            $region28: #{rot_dist.1} parent=23 // pred_fallthru
              _
            // Predicated region
            $region29: #{rot_dist.1} parent=23 // pred_check
              _
            $region30: #{rot_dist.1} parent=23 // pred_check_branch
              %119 = sbr.rel target = $region32
            $region31: #{rot_dist.1} parent=23 // pred_region
              %s121 = ssub.s32 256, 1
              loop: start=0, step=1, limit=1
              $region33: #{rot_dist.1} parent=31 // loop_pre_header
                _
              $region34: #{rot_dist.1} parent=31 // loop_header
                %s123 = sphi 0, %s127
                %p124 = scmp.ge.s32.totalorder %s123, 1
                %s128 = sphi %s113, %s113
                %s129 = sphi %s111, %s111
              $region35: #{rot_dist.1} parent=31 // loop_header_branch
                %126 = sbr.rel (%p124) target = $region39
              $region36: #{rot_dist.1} parent=31 // loop_body
                %v130 = vld [vmem:[%s128] sm:%s121]
                %131 = vst [vmem:[%s129] sm:%s121] %v130
                %v132 = vld [vmem:[%s128 + $0x18] sm:%s121]
                %133 = vst [vmem:[%s129 + $0x8] sm:%s121] %v132
              $region37: #{rot_dist.1} parent=31 // loop_footer
                %s127 = sadd.s32 1, %s123
              $region38: #{rot_dist.1} parent=31 // loop_footer_branch
                %122 = sbr.rel target = $region34
              $region39: #{rot_dist.1} parent=31 // loop_exit
                _
            $region32: #{rot_dist.1} parent=23 // pred_fallthru
              _
          $region24: #{rot_dist.1} parent=19 // pred_fallthru
            _
          %150 = vnop
        $region20: #{rot_dist.1} parent=15 // pred_fallthru
          _
        // Predicated region
        $region55: #{rot_dist.1} parent=15 // pred_check
          %p151 = pneg %p54
        $region56: #{rot_dist.1} parent=15 // pred_check_branch
          %153 = sbr.rel (%p151) target = $region58
        $region57: #{rot_dist.1} parent=15 // pred_region
          %s154 = sand.u32 %s44, 1
          %s155 = sand.u32 %s44, 1
          %s156 = smul.addr %s155, 16
          %s157 = scalar_lea.vmem [#allocation3], %s156
          %s158 = smul.addr %s8, 8
          %s159 = scalar_lea.vmem %s1, %s158
          // Predicated region
          $region59: #{rot_dist.1} parent=57 // pred_check
            _
          $region60: #{rot_dist.1} parent=57 // pred_check_branch
            %161 = sbr.rel (0) target = $region62
          $region61: #{rot_dist.1} parent=57 // pred_region
            // Predicated region
            $region63: #{rot_dist.1} parent=61 // pred_check
              _
            $region64: #{rot_dist.1} parent=61 // pred_check_branch
              %163 = sbr.rel (0) target = $region66
            $region65: #{rot_dist.1} parent=61 // pred_region
              // Predicated region
              $region78: #{rot_dist.1} parent=65 // pred_check
                _
              $region79: #{rot_dist.1} parent=65 // pred_check_branch
                %181 = sbr.rel (0) target = $region81
              $region80: #{rot_dist.1} parent=65 // pred_region
                loop: start=0, step=1, limit=1
                $region82: #{rot_dist.1} parent=80 // loop_pre_header
                  _
                $region83: #{rot_dist.1} parent=80 // loop_header
                  %s183 = sphi 0, %s187
                  %p184 = scmp.ge.s32.totalorder %s183, 1
                  %s188 = sphi %s159, %s159
                  %s189 = sphi %s157, %s157
                $region84: #{rot_dist.1} parent=80 // loop_header_branch
                  %186 = sbr.rel (%p184) target = $region88
                $region85: #{rot_dist.1} parent=80 // loop_body
                  %v190 = vld [vmem:[%s188] sm:$0xff]
                  %191 = vst [vmem:[%s189] sm:$0xff] %v190
                  %v192 = vld [vmem:[%s188 + $0x18] sm:$0xff]
                  %193 = vst [vmem:[%s189 + $0x8] sm:$0xff] %v192
                $region86: #{rot_dist.1} parent=80 // loop_footer
                  %s187 = sadd.s32 1, %s183
                $region87: #{rot_dist.1} parent=80 // loop_footer_branch
                  %182 = sbr.rel target = $region83
                $region88: #{rot_dist.1} parent=80 // loop_exit
                  _
              $region81: #{rot_dist.1} parent=65 // pred_fallthru
                _
              // Predicated region
              $region89: #{rot_dist.1} parent=65 // pred_check
                _
              $region90: #{rot_dist.1} parent=65 // pred_check_branch
                %195 = sbr.rel target = $region92
              $region91: #{rot_dist.1} parent=65 // pred_region
                _
              $region92: #{rot_dist.1} parent=65 // pred_fallthru
                _
            $region66: #{rot_dist.1} parent=61 // pred_fallthru
              _
            // Predicated region
            $region67: #{rot_dist.1} parent=61 // pred_check
              _
            $region68: #{rot_dist.1} parent=61 // pred_check_branch
              %165 = sbr.rel target = $region70
            $region69: #{rot_dist.1} parent=61 // pred_region
              %s167 = ssub.s32 256, 1
              loop: start=0, step=1, limit=1
              $region71: #{rot_dist.1} parent=69 // loop_pre_header
                _
              $region72: #{rot_dist.1} parent=69 // loop_header
                %s169 = sphi 0, %s173
                %p170 = scmp.ge.s32.totalorder %s169, 1
                %s174 = sphi %s159, %s159
                %s175 = sphi %s157, %s157
              $region73: #{rot_dist.1} parent=69 // loop_header_branch
                %172 = sbr.rel (%p170) target = $region77
              $region74: #{rot_dist.1} parent=69 // loop_body
                %v176 = vld [vmem:[%s174] sm:%s167]
                %177 = vst [vmem:[%s175] sm:%s167] %v176
                %v178 = vld [vmem:[%s174 + $0x18] sm:%s167]
                %179 = vst [vmem:[%s175 + $0x8] sm:%s167] %v178
              $region75: #{rot_dist.1} parent=69 // loop_footer
                %s173 = sadd.s32 1, %s169
              $region76: #{rot_dist.1} parent=69 // loop_footer_branch
                %168 = sbr.rel target = $region72
              $region77: #{rot_dist.1} parent=69 // loop_exit
                _
            $region70: #{rot_dist.1} parent=61 // pred_fallthru
              _
          $region62: #{rot_dist.1} parent=57 // pred_fallthru
            _
          %196 = vnop
        $region58: #{rot_dist.1} parent=15 // pred_fallthru
          _
      $region16: #{rot_dist.1} parent=5 // pred_fallthru
        _
      %p197 = scmp.le.s32.totalorder 1, %s8
      %p198 = scmp.lt.s32.totalorder %s8, 4
      %p199 = pnand %p197, %p198
      %p200 = pneg %p199
      // Predicated region
      $region93: #{rot_dist.1} parent=5 // pred_check
        _
      $region94: #{rot_dist.1} parent=5 // pred_check_branch
        %202 = sbr.rel (%p199) target = $region96
      $region95: #{rot_dist.1} parent=5 // pred_region
        %s203 = ssub.s32 %s8, 1
        %s204 = sand.u32 %s21, 1
        %s205 = sand.u32 %s21, 1
        %s206 = smul.addr %s205, 16
        %s207 = scalar_lea.vmem [#allocation2], %s206
        // Predicated region
        $region97: #{rot_dist.1} parent=95 // pred_check
          %p208 = pneg %p34
        $region98: #{rot_dist.1} parent=95 // pred_check_branch
          %210 = sbr.rel (%p208) target = $region100
        $region99: #{rot_dist.1} parent=95 // pred_region
          _
        $region100: #{rot_dist.1} parent=95 // pred_fallthru
          _
        %s211 = sand.u32 %s47, 1
        %s212 = sand.u32 %s47, 1
        %s213 = smul.addr %s212, 16
        %s214 = scalar_lea.vmem [#allocation3], %s213
        // Predicated region
        $region101: #{rot_dist.1} parent=95 // pred_check
          %p215 = pneg %p60
        $region102: #{rot_dist.1} parent=95 // pred_check_branch
          %217 = sbr.rel (%p215) target = $region104
        $region103: #{rot_dist.1} parent=95 // pred_region
          _
        $region104: #{rot_dist.1} parent=95 // pred_fallthru
          _
        %s218 = sand.u32 %s21, 1
        %s219 = sand.u32 %s21, 1
        %s220 = smul.addr %s219, 16
        %s221 = scalar_lea.vmem [#allocation2], %s220
        %p222 = pneg %p34
        %p223 = pneg %p31
        %s224 = sand.u32 %s47, 1
        %s225 = sand.u32 %s47, 1
        %s226 = smul.addr %s225, 16
        %s227 = scalar_lea.vmem [#allocation3], %s226
        %p228 = pneg %p60
        %p229 = pneg %p57
        %p230 = pneg %p86
        %p231 = pneg %p83
        %p232 = scmp.lt.s32.totalorder %s13, 2
        %s233 = scalar_select %p232, %s13, 2
        %s234 = scalar_lea.vmem %s2, %s233
        %p235 = scmp.lt.s32.totalorder %s13, 2
        %s236 = scalar_select %p235, %s13, 2
        %s237 = scalar_lea.vmem %s2, %s236
        %v238 = vld [vmem:[%s207] sm:$0xff]
        %v239 = vld [vmem:[%s207 + $0x8] sm:$0x1]
        %v240 = vld [vmem:[%s214] sm:$0xff]
        %v241 = vld [vmem:[%s214 + $0x8] sm:$0x1]
        %v242 = vmul.f32 %v238, %v240
        %v243 = vmul.f32 %v239, %v241
        %vm244 = vcmask 1040384
        %v245 = vsel %vm244, %v243, 0.0
        %v246 = vadd.f32 %v242, %v245
        %v247 = vrot.slane %v246, 4
        %v248 = vadd.f32 %v246, %v247
        %v249 = vrot.slane %v248, 2
        %v250 = vadd.f32 %v248, %v249
        %v251 = vrot.slane %v250, 1
        %v252 = vadd.f32 %v250, %v251
        %v253 = vsub.f32 %v252, 1.0
        %v254 = vmul.f32 %v253, 0.5
        %v255 = vmax.f32 %v254, -0.999999
        %v256 = vmin.f32 %v255, 0.999999
        %v257 = vand.u32 2147483647, %v256
        %v258 = vmul.f32 %v257, -0.0012624911
        %v259 = vadd.f32 %v258, 0.00667009
        %v260 = vmul.f32 %v259, %v257
        %v261 = vadd.f32 %v260, -0.017088126
        %v262 = vmul.f32 %v261, %v257
        %v263 = vadd.f32 %v262, 0.03089188
        %v264 = vmul.f32 %v263, %v257
        %v265 = vadd.f32 %v264, -0.050174303
        %v266 = vmul.f32 %v265, %v257
        %v267 = vadd.f32 %v266, 0.08897899
        %v268 = vmul.f32 %v267, %v257
        %v269 = vadd.f32 %v268, -0.2145988
        %v270 = vmul.f32 %v269, %v257
        %v271 = vadd.f32 %v270, 1.5707963
        %v272 = vsub.f32 1.0, %v257
        %v273 = vmax.f32 %v272, 0.0
        %v274 = vrsqrt.pop %v273
        %v275 = vmul.f32 %v273, %v274
        %vm276 = vcmp.eq.f32.partialorder %v273, inf
        %v277 = vsel %vm276, %v273, %v275
        %vm278 = vcmp.eq.f32.partialorder %v273, 0.0
        %v279 = vand.u32 %v273, 2147483648
        %v280 = vsel %vm278, %v279, %v277
        %v281 = vmul.f32 %v280, %v271
        %vm282 = vcmp.ge.f32.partialorder %v256, 0.0
        %v283 = vsub.f32 3.1415927, %v281
        %v284 = vsel %vm282, %v281, %v283
        %v285 = vlaneseq
        %v286 = vand.u32 %v285, 127
        %s287 = smul.u32 %s13, 128
        %v288 = vstv %s287
        %v289 = vadd.s32 %v286, %v288
        %vm290 = vcmp.lt.s32.totalorder %v289, 300
        %v291 = vsel %vm290, %v284, 0.0
        %292 = vadd.xlane.f32.xlu0 %v291
        %v293 = vpop.xlane.xlu0 %292
        %294 = vst [vmem:[%s237] sm:$0x1] %v293
        %p295 = scmp.lt.s32.totalorder %s13, 2
        %s296 = scalar_select %p295, %s13, 2
        %s297 = scalar_lea.vmem %s2, %s296
        // Predicated region
        $region105: #{rot_dist.1} parent=95 // pred_check
          %p298 = pneg %p83
        $region106: #{rot_dist.1} parent=95 // pred_check_branch
          %300 = sbr.rel (%p298) target = $region108
        $region107: #{rot_dist.1} parent=95 // pred_region
          _
        $region108: #{rot_dist.1} parent=95 // pred_fallthru
          _
      $region96: #{rot_dist.1} parent=5 // pred_fallthru
        _
      %p301 = scmp.le.s32.totalorder 2, %s8
      // Predicated region
      $region109: #{rot_dist.1} parent=5 // pred_check
        %p302 = pneg %p301
      $region110: #{rot_dist.1} parent=5 // pred_check_branch
        %304 = sbr.rel (%p302) target = $region112
      $region111: #{rot_dist.1} parent=5 // pred_region
        %s305 = ssub.s32 %s8, 2
        // Predicated region
        $region113: #{rot_dist.1} parent=111 // pred_check
          %p306 = pneg %p89
        $region114: #{rot_dist.1} parent=111 // pred_check_branch
          %308 = sbr.rel (%p306) target = $region116
        $region115: #{rot_dist.1} parent=111 // pred_region
          %p309 = scmp.lt.s32.totalorder %s14, 2
          %s310 = scalar_select %p309, %s14, 2
          %s311 = scalar_lea.vmem %s2, %s310
        $region116: #{rot_dist.1} parent=111 // pred_fallthru
          _
      $region112: #{rot_dist.1} parent=5 // pred_fallthru
        _
    $region6: #{rot_dist.1} parent=1 // loop_footer
      %s12 = sadd.s32 1, %s8
    $region7: #{rot_dist.1} parent=1 // loop_footer_branch
      %7 = sbr.rel target = $region3
    $region8: #{rot_dist.1} parent=1 // loop_exit
      _

</llo_original>
